<compile_context>
chip_gen: v6e
topology: v6e:2x2x1
jax: 0.10.0
libtpu: 0.0.40
codegen_flags: <defaults>
</compile_context>

<pallas_src>
import functools
import math

import jax
import jax.numpy as jnp
from jax.experimental import pallas as pl
from jax.experimental.pallas import tpu as pltpu


def _embed_gather_kernel(ids_ref, emb_ref, out_ref, *, scale, token_tile,
                         vocab_size):
    # ids_ref: (N_pad,) int32 in SMEM (scalar prefetch)
    # emb_ref: (V, D) embedding table in VMEM (constant block -> fetched once)
    # out_ref: (token_tile, D) output tile in VMEM
    step = pl.program_id(0)
    base = step * token_tile

    def body(j, carry):
        tok = ids_ref[base + j]
        # Defined handling of out-of-range ids: clamp into [0, V).
        tok = jnp.minimum(jnp.maximum(tok, 0), vocab_size - 1)
        row = emb_ref[pl.ds(tok, 1), :]                         # (1, D)
        # Fold the sqrt(d_model) scale into the row copy epilogue.
        out_ref[pl.ds(j, 1), :] = (row * scale).astype(out_ref.dtype)
        return carry

    jax.lax.fori_loop(0, token_tile, body, 0)


def input_embeddings(x, emb_table, d_model, *, token_tile=256):
    """x: (B, S) integer token ids; emb_table: (V, d_model)."""
    B, S = x.shape
    V, D = emb_table.shape
    assert D == d_model
    assert token_tile % 8 == 0, "token_tile must be a multiple of 8 (sublanes)"

    N = B * S
    n_tiles = pl.cdiv(N, token_tile)
    n_pad = n_tiles * token_tile

    ids = x.reshape(N).astype(jnp.int32)
    if n_pad != N:
        # Padded slots gather row 0; they are sliced off below.
        ids = jnp.pad(ids, (0, n_pad - N))

    scale = float(math.sqrt(d_model))
    itemsize = jnp.dtype(emb_table.dtype).itemsize
    # Resident table (double-buffered by default) + double-buffered out tile
    # + headroom for compiler scratch.
    vmem_limit = int(min(2 * V * D * itemsize
                         + 2 * token_tile * D * itemsize
                         + (8 << 20),
                         64 << 20))

    kernel = functools.partial(_embed_gather_kernel, scale=scale,
                               token_tile=token_tile, vocab_size=V)

    out_flat = pl.pallas_call(
        kernel,
        out_shape=jax.ShapeDtypeStruct((n_pad, D), emb_table.dtype),
        grid_spec=pltpu.PrefetchScalarGridSpec(
            num_scalar_prefetch=1,
            grid=(n_tiles,),
            in_specs=[
                # Full table, constant block index -> loaded into VMEM once.
                pl.BlockSpec((V, D), lambda i, ids_ref: (0, 0)),
            ],
            out_specs=pl.BlockSpec((token_tile, D), lambda i, ids_ref: (i, 0)),
        ),
        compiler_params=pltpu.CompilerParams(
            dimension_semantics=("parallel",),
            vmem_limit_bytes=vmem_limit,
        ),
    )(ids, emb_table)

    return out_flat[:N].reshape(B, S, D)


if __name__ == "__main__":
    # Small shapes consistent with the module: batch=2, seq=8, d_model=32, vocab=64.
    B, S, D, V = 2, 8, 32, 64

    key = jax.random.PRNGKey(0)
    k_ids, k_emb = jax.random.split(key)

    x = jax.random.randint(k_ids, (B, S), 0, V, dtype=jnp.int32)
    # nn.Embedding default init: N(0, 1)
    emb_table = jax.random.normal(k_emb, (V, D), dtype=jnp.float32)

    out = input_embeddings(x, emb_table, D)
    out = jax.block_until_ready(out)

    # Reference check (plain JAX gather).
    ref = jnp.take(emb_table, x, axis=0) * math.sqrt(D)
    assert out.shape == (B, S, D)
    assert jnp.allclose(out, ref, atol=1e-5, rtol=1e-5), "mismatch vs reference"

    print("KERNEL_OK")
</pallas_src>

<mosaic_0001>
module attributes {stable_mosaic.version = 11 : i64} {
  func.func @_embed_gather_kernel(%arg0: i32, %arg1: memref<256xi32, #tpu.memory_space<smem>>, %arg2: memref<64x32xf32, #tpu.memory_space<vmem>>, %arg3: memref<256x32xf32, #tpu.memory_space<vmem>>) attributes {dimension_semantics = [#tpu.dimension_semantics<parallel>], iteration_bounds = array<i64: 1>, scalar_prefetch = 1 : i64, scratch_operands = 0 : i64, tpu.core_type = #tpu.core_type<tc>, window_params = [{pipeline_mode = #tpu.pipeline_mode<synchronous>, transform_indices = @transform_0, window_bounds = array<i64: 64, 32>}, {transform_indices = @transform_1, window_bounds = array<i64: 256, 32>}]} {
    %c256_i32 = arith.constant 256 : i32
    %0 = arith.muli %arg0, %c256_i32 : i32
    %c0_i32 = arith.constant 0 : i32
    %c256_i32_0 = arith.constant 256 : i32
    %1 = arith.addi %c0_i32, %c256_i32_0 : i32
    %c1_i32 = arith.constant 1 : i32
    scf.for %arg4 = %c0_i32 to %1 step %c1_i32  : i32 {
      %2 = arith.addi %0, %arg4 : i32
      %3 = arith.index_cast %2 : i32 to index
      %4 = memref.load %arg1[%3] : memref<256xi32, #tpu.memory_space<smem>>
      %c0_i32_2 = arith.constant 0 : i32
      %5 = arith.maxsi %4, %c0_i32_2 : i32
      %c63_i32 = arith.constant 63 : i32
      %6 = arith.minsi %5, %c63_i32 : i32
      %7 = arith.index_cast %6 : i32 to index
      %c0 = arith.constant 0 : index
      %8 = vector.load %arg2[%7, %c0] : memref<64x32xf32, #tpu.memory_space<vmem>>, vector<1x32xf32>
      %cst = arith.constant 5.65685415 : f32
      %9 = vector.broadcast %cst : f32 to vector<1x32xf32>
      %10 = arith.mulf %8, %9 : vector<1x32xf32>
      %11 = arith.index_cast %arg4 : i32 to index
      %c0_3 = arith.constant 0 : index
      %12 = vector.load %arg3[%11, %c0_3] : memref<256x32xf32, #tpu.memory_space<vmem>>, vector<1x32xf32>
      tpu.vector_store %arg3[%11, %c0_3], %10 {strides = array<i32>} : memref<256x32xf32, #tpu.memory_space<vmem>>, vector<1x32xf32>,
    }
    %c256_i32_1 = arith.constant 256 : i32
    return
  }
  func.func @transform_0(%arg0: i32, %arg1: memref<256xi32, #tpu.memory_space<smem>>) -> (i32, i32) {
    %c0_i32 = arith.constant 0 : i32
    %c0_i32_0 = arith.constant 0 : i32
    %c0_i32_1 = arith.constant 0 : i32
    return %c0_i32, %c0_i32_0 : i32, i32
  }
  func.func @transform_1(%arg0: i32, %arg1: memref<256xi32, #tpu.memory_space<smem>>) -> (i32, i32) {
    %c0_i32 = arith.constant 0 : i32
    %c0_i32_0 = arith.constant 0 : i32
    return %arg0, %c0_i32 : i32, i32
  }
}

</mosaic_0001>

<llo_original>
// kernel: tpu_custom_call.1
$region0: #{tpu_custom_call.1}
  #allocation0 [shape = 'u32[]', space=smem, size = 0x4, offset = 0x4, fixed_abs, tag = 'smem constant byte address 0x4 - core index']
  #allocation1 [shape = 'u32[144,128]{1,0:T(1,128)}', space=vmem, size = 0x12000, scoped, tag = 'internal scratch']
  #allocation2 [shape = 's32[1]{0}', space=sflag, size = 0x4, scoped, tag = 'scoped memory for tpu_custom_call.1']
  #allocation3 [shape = 'u8[1024]{0}', space=smem, size = 0x400, scoped, tag = 'prefetched SMEM operand 0']
  %s0 = inlined_call_operand.vmem [shape: s32[256], index: 0, kind: input, shape index: {}]
  %s1 = inlined_call_operand.vmem [shape: f32[64,32], index: 1, kind: input, shape index: {}]
  %s2 = inlined_call_operand.vmem [shape: f32[256,32], index: 2, kind: output, shape index: {}]
  %s3 = sld [smem:[#allocation0]]
  $region21: #{tpu_custom_call.1} parent=0
    _
  %s5 = ssub.s32 1, %s3
  %s6 = scalar_select 0, %s5, %s3
  %s7 = sshll.u32 %s0, 4
  %s8 = int_to_ptr.vmem [resolvable:$true] %s7
  %10 = dma.vmem_to_smem %s8, 32, [#allocation3], [#allocation2]
  %11 = dma.done [#allocation2], 32
  %12 = sfence
  // Predicated region
  $region2: #{tpu_custom_call.1} parent=0 // pred_check
    _
  $region3: #{tpu_custom_call.1} parent=0 // pred_check_branch
    %14 = sbr.rel (0) target = $region5
  $region4: #{tpu_custom_call.1} parent=0 // pred_region
    _
  $region5: #{tpu_custom_call.1} parent=0 // pred_fallthru
    _
  %s15 = smul.u32 0, 256
  loop: start=0, step=1, limit=256
  $region6: #{tpu_custom_call.1} parent=0 // loop_pre_header
    _
  $region7: #{tpu_custom_call.1} parent=0 // loop_header
    %s17 = sphi 0, %s21
    %p18 = scmp.ge.s32.totalorder %s17, 256
  $region8: #{tpu_custom_call.1} parent=0 // loop_header_branch
    %20 = sbr.rel (%p18) target = $region12
  $region9: #{tpu_custom_call.1} parent=0 // loop_body
    %s22 = sadd.s32 %s15, %s17
    %s23 = sld [smem:[#allocation3 + %s22]]
    %p24 = scmp.gt.s32.totalorder %s23, 0
    %s25 = scalar_select %p24, %s23, 0
    %p26 = scmp.lt.s32.totalorder %s25, 63
    %s27 = scalar_select %p26, %s25, 63
    %s28 = scalar_lea.vmem %s1, %s27
    %v29 = vld [vmem:[%s28] sm:$0x1]
    %v30 = vmul.f32 %v29, 5.656854
    %s31 = scalar_lea.vmem %s2, %s17
    %vm32 = vcmask 253952
    %33 = vst.msk [vmem:[%s31] sm:$0x1] %vm32, %v30
  $region10: #{tpu_custom_call.1} parent=0 // loop_footer
    %s21 = sadd.s32 1, %s17
  $region11: #{tpu_custom_call.1} parent=0 // loop_footer_branch
    %16 = sbr.rel target = $region7
  $region12: #{tpu_custom_call.1} parent=0 // loop_exit
    _
  // Predicated region
  $region13: #{tpu_custom_call.1} parent=0 // pred_check
    _
  $region14: #{tpu_custom_call.1} parent=0 // pred_check_branch
    %35 = sbr.rel (0) target = $region16
  $region15: #{tpu_custom_call.1} parent=0 // pred_region
    _
  $region16: #{tpu_custom_call.1} parent=0 // pred_fallthru
    _
  // Predicated region
  $region17: #{tpu_custom_call.1} parent=0 // pred_check
    _
  $region18: #{tpu_custom_call.1} parent=0 // pred_check_branch
    %37 = sbr.rel (0) target = $region20
  $region19: #{tpu_custom_call.1} parent=0 // pred_region
    _
  $region20: #{tpu_custom_call.1} parent=0 // pred_fallthru
    _

</llo_original>
